<compile_context>
chip_gen: v7x
topology: tpu7x:2x2x1
jax: 0.10.0
libtpu: 0.0.40
codegen_flags: <defaults>
</compile_context>

<pallas_src>
import jax
import jax.numpy as jnp
from jax import lax
from jax.experimental import pallas as pl
from jax.experimental.pallas import tpu as pltpu


_DEFAULT_TB = 256                 # batch elements per grid step
_NBUF = 8                         # DMA ring depth per gathered operand (HBM path)
_VMEM_TABLE_BYTES = 12 * 2**20    # raw table bytes below which tables go to VMEM
                                  # (double-buffered copy still fits v7x / v5e scope)


def _round_up(x, m):
    return (x + m - 1) // m * m


# ---------------------------------------------------------------------------
# Path A: embedding tables resident in VMEM (small / medium tables).
# ---------------------------------------------------------------------------
def _bpr_vmem_kernel(uidx_ref, iidx_ref, jidx_ref,     # SMEM scalar prefetch (B_pad,) each
                     uemb_ref, iemb_ref,                # full tables in VMEM
                     out_ref,                           # (TB, 2)
                     ubuf, ibuf, jbuf):                 # (TB, F) VMEM scratch
    tb = ubuf.shape[0]
    base = pl.program_id(0) * tb

    # Gather TB rows per operand from the VMEM-resident tables into (TB, F)
    # scratch tiles: pure VMEM loads/stores, no HBM traffic per element.
    def gather(r, carry):
        g = base + r
        ubuf[pl.ds(r, 1), :] = uemb_ref[pl.ds(uidx_ref[g], 1), :]
        ibuf[pl.ds(r, 1), :] = iemb_ref[pl.ds(iidx_ref[g], 1), :]
        jbuf[pl.ds(r, 1), :] = iemb_ref[pl.ds(jidx_ref[g], 1), :]
        return carry

    lax.fori_loop(0, tb, gather, 0, unroll=False)

    # One elementwise multiply + one lane-reduce over the whole (TB, F) tile.
    u = ubuf[...].astype(jnp.float32)
    vi = ibuf[...].astype(jnp.float32)
    vj = jbuf[...].astype(jnp.float32)
    pred_i = jnp.sum(u * vi, axis=-1, keepdims=True)    # (TB, 1)
    pred_j = jnp.sum(u * vj, axis=-1, keepdims=True)    # (TB, 1)
    out_ref[...] = jnp.concatenate([pred_i, pred_j], axis=-1).astype(out_ref.dtype)


def _bpr_vmem_call(uidx, iidx, jidx, user_emb, item_emb, tb):
    b_pad = uidx.shape[0]
    u_rows, f = user_emb.shape
    i_rows, _ = item_emb.shape

    grid_spec = pltpu.PrefetchScalarGridSpec(
        num_scalar_prefetch=3,
        grid=(b_pad // tb,),
        in_specs=[
            # Whole table per block; the block index is constant across the
            # grid, so the pipeline only DMAs each table into VMEM once.
            pl.BlockSpec((u_rows, f), lambda t, u, i, j: (0, 0)),
            pl.BlockSpec((i_rows, f), lambda t, u, i, j: (0, 0)),
        ],
        out_specs=pl.BlockSpec((tb, 2), lambda t, u, i, j: (t, 0)),
        scratch_shapes=[
            pltpu.VMEM((tb, f), user_emb.dtype),
            pltpu.VMEM((tb, f), item_emb.dtype),
            pltpu.VMEM((tb, f), item_emb.dtype),
        ],
    )

    itemsize = jnp.dtype(user_emb.dtype).itemsize
    cost = pl.CostEstimate(
        flops=4 * b_pad * f,
        transcendentals=0,
        bytes_accessed=(u_rows + i_rows) * f * itemsize + 3 * b_pad * 4 + b_pad * 2 * 4,
    )

    return pl.pallas_call(
        _bpr_vmem_kernel,
        out_shape=jax.ShapeDtypeStruct((b_pad, 2), jnp.float32),
        grid_spec=grid_spec,
        compiler_params=pltpu.CompilerParams(
            dimension_semantics=("parallel",),      # batch tiles shard across TCs (v7x)
            vmem_limit_bytes=32 * 2**20),           # <= physical VMEM on all gens
        cost_estimate=cost,
    )(uidx, iidx, jidx, user_emb, item_emb)


# ---------------------------------------------------------------------------
# Path B: tables stay in HBM; manual pipelined row-gather DMAs (large tables).
# ---------------------------------------------------------------------------
def _bpr_hbm_kernel(uidx_ref, iidx_ref, jidx_ref,      # SMEM scalar prefetch
                    uemb_hbm, iemb_hbm,                 # (U,1,F), (I,1,F) in HBM
                    out_ref,                            # (TB, 2)
                    ubuf, ibuf, jbuf,                   # (TB, F) VMEM scratch
                    sems):                              # DMA sems (3, NBUF)
    tb = ubuf.shape[0]
    base = pl.program_id(0) * tb

    def row_copy(table_hbm, row, buf, r, sem):
        # src: one (1, F) embedding row in HBM; dst: row r of the VMEM tile.
        return pltpu.make_async_copy(table_hbm.at[row], buf.at[pl.ds(r, 1), :], sem)

    def issue(r):
        slot = r & (_NBUF - 1)
        g = base + r
        row_copy(uemb_hbm, uidx_ref[g], ubuf, r, sems.at[0, slot]).start()
        row_copy(iemb_hbm, iidx_ref[g], ibuf, r, sems.at[1, slot]).start()
        row_copy(iemb_hbm, jidx_ref[g], jbuf, r, sems.at[2, slot]).start()

    def wait(r):
        slot = r & (_NBUF - 1)
        # Wait descriptors only need the semaphore and copy size; src row 0 is
        # a placeholder of the same shape.
        row_copy(uemb_hbm, 0, ubuf, r, sems.at[0, slot]).wait()
        row_copy(iemb_hbm, 0, ibuf, r, sems.at[1, slot]).wait()
        row_copy(iemb_hbm, 0, jbuf, r, sems.at[2, slot]).wait()

    def body(r, carry):
        @pl.when(r >= _NBUF)
        def _():
            wait(r - _NBUF)          # free this ring slot before reusing it
        issue(r)                     # keep up to 3 * NBUF row-DMAs in flight
        return carry

    lax.fori_loop(0, tb, body, 0, unroll=False)

    def drain(r, carry):
        wait(r)
        return carry

    lax.fori_loop(max(tb - _NBUF, 0), tb, drain, 0, unroll=False)

    u = ubuf[...].astype(jnp.float32)
    vi = ibuf[...].astype(jnp.float32)
    vj = jbuf[...].astype(jnp.float32)
    pred_i = jnp.sum(u * vi, axis=-1, keepdims=True)
    pred_j = jnp.sum(u * vj, axis=-1, keepdims=True)
    out_ref[...] = jnp.concatenate([pred_i, pred_j], axis=-1).astype(out_ref.dtype)


def _bpr_hbm_call(uidx, iidx, jidx, user_emb, item_emb, tb):
    b_pad = uidx.shape[0]
    u_rows, f = user_emb.shape
    i_rows, _ = item_emb.shape

    grid_spec = pltpu.PrefetchScalarGridSpec(
        num_scalar_prefetch=3,
        grid=(b_pad // tb,),
        in_specs=[
            pl.BlockSpec(memory_space=pl.ANY),   # user table stays in HBM
            pl.BlockSpec(memory_space=pl.ANY),   # item table stays in HBM
        ],
        out_specs=pl.BlockSpec((tb, 2), lambda t, u, i, j: (t, 0)),
        scratch_shapes=[
            pltpu.VMEM((tb, f), user_emb.dtype),
            pltpu.VMEM((tb, f), item_emb.dtype),
            pltpu.VMEM((tb, f), item_emb.dtype),
            pltpu.SemaphoreType.DMA((3, _NBUF)),
        ],
    )

    itemsize = jnp.dtype(user_emb.dtype).itemsize
    cost = pl.CostEstimate(
        flops=4 * b_pad * f,
        transcendentals=0,
        bytes_accessed=3 * b_pad * f * itemsize + 3 * b_pad * 4 + b_pad * 2 * 4,
    )

    return pl.pallas_call(
        _bpr_hbm_kernel,
        out_shape=jax.ShapeDtypeStruct((b_pad, 2), jnp.float32),
        grid_spec=grid_spec,
        compiler_params=pltpu.CompilerParams(
            dimension_semantics=("parallel",)),
        cost_estimate=cost,
    )(uidx, iidx, jidx,
      user_emb.reshape(u_rows, 1, f),
      item_emb.reshape(i_rows, 1, f))


# ---------------------------------------------------------------------------
# Public forward.
# ---------------------------------------------------------------------------
def bpr_forward(user, item_i, item_j, user_emb, item_emb):
    b = user.shape[0]
    u_rows, f = user_emb.shape
    i_rows, f2 = item_emb.shape
    assert f == f2, "user/item factor dims must match"

    # PyTorch's nn.Embedding raises on out-of-range indices; here an OOB index
    # would become an unchecked row read, so we clamp instead (documented
    # divergence for invalid inputs only).
    uidx = jnp.clip(user.astype(jnp.int32), 0, u_rows - 1)
    iidx = jnp.clip(item_i.astype(jnp.int32), 0, i_rows - 1)
    jidx = jnp.clip(item_j.astype(jnp.int32), 0, i_rows - 1)

    # Batch tile: up to _DEFAULT_TB elements per grid step; pad B so the grid
    # divides evenly (padded rows gather row 0 and are sliced off afterwards).
    tb = _DEFAULT_TB if b >= _DEFAULT_TB else max(8, _round_up(b, 8))
    b_pad = _round_up(b, tb)
    pad = b_pad - b
    if pad:
        uidx = jnp.pad(uidx, (0, pad))
        iidx = jnp.pad(iidx, (0, pad))
        jidx = jnp.pad(jidx, (0, pad))

    # TODO(synk): for batches of several hundred thousand, tile the index
    # arrays into SMEM per grid step instead of scalar-prefetching all of them.
    # TODO(synk): for F < 128, pack multiple embedding rows per 128-lane row to
    # improve lane utilization and DMA efficiency further.

    table_bytes = (user_emb.size + item_emb.size) * jnp.dtype(user_emb.dtype).itemsize
    if table_bytes <= _VMEM_TABLE_BYTES:
        out = _bpr_vmem_call(uidx, iidx, jidx, user_emb, item_emb, tb)
    else:
        out = _bpr_hbm_call(uidx, iidx, jidx, user_emb, item_emb, tb)

    return out[:b, 0], out[:b, 1]


bpr_forward_jit = jax.jit(bpr_forward)


if __name__ == "__main__":
    # Small shapes consistent with the module.
    user_num, item_num, factor_num = 32, 64, 32
    batch = 8

    key = jax.random.PRNGKey(0)
    k_u, k_i, k_uid, k_iid, k_jid = jax.random.split(key, 5)

    # nn.init.normal_(..., std=0.01)
    embed_user = (0.01 * jax.random.normal(k_u, (user_num, factor_num))).astype(jnp.float32)
    embed_item = (0.01 * jax.random.normal(k_i, (item_num, factor_num))).astype(jnp.float32)

    user   = jax.random.randint(k_uid, (batch,), 0, user_num, dtype=jnp.int32)
    item_i = jax.random.randint(k_iid, (batch,), 0, item_num, dtype=jnp.int32)
    item_j = jax.random.randint(k_jid, (batch,), 0, item_num, dtype=jnp.int32)

    pred_i, pred_j = bpr_forward_jit(user, item_i, item_j, embed_user, embed_item)
    jax.block_until_ready((pred_i, pred_j))

    # Pure-JAX reference check.
    u_ref  = embed_user[user]
    vi_ref = embed_item[item_i]
    vj_ref = embed_item[item_j]
    ref_i = jnp.sum(u_ref * vi_ref, axis=-1)
    ref_j = jnp.sum(u_ref * vj_ref, axis=-1)

    assert jnp.allclose(pred_i, ref_i, atol=1e-6, rtol=1e-5), "pred_i mismatch"
    assert jnp.allclose(pred_j, ref_j, atol=1e-6, rtol=1e-5), "pred_j mismatch"

    print("KERNEL_OK")
</pallas_src>

<mosaic_0001>
module attributes {stable_mosaic.version = 11 : i64} {
  func.func @_bpr_vmem_kernel(%arg0: i32, %arg1: memref<8xi32, #tpu.memory_space<smem>>, %arg2: memref<8xi32, #tpu.memory_space<smem>>, %arg3: memref<8xi32, #tpu.memory_space<smem>>, %arg4: memref<32x32xf32, #tpu.memory_space<vmem>>, %arg5: memref<64x32xf32, #tpu.memory_space<vmem>>, %arg6: memref<8x2xf32, #tpu.memory_space<vmem>>, %arg7: memref<8x32xf32, #tpu.memory_space<vmem>>, %arg8: memref<8x32xf32, #tpu.memory_space<vmem>>, %arg9: memref<8x32xf32, #tpu.memory_space<vmem>>) attributes {dimension_semantics = [#tpu.dimension_semantics<parallel>], iteration_bounds = array<i64: 1>, scalar_prefetch = 3 : i64, scratch_operands = 3 : i64, tpu.core_type = #tpu.core_type<tc>, window_params = [{pipeline_mode = #tpu.pipeline_mode<synchronous>, transform_indices = @transform_0, window_bounds = array<i64: 32, 32>}, {pipeline_mode = #tpu.pipeline_mode<synchronous>, transform_indices = @transform_1, window_bounds = array<i64: 64, 32>}, {transform_indices = @transform_2, window_bounds = array<i64: 8, 2>}]} {
    %c8_i32 = arith.constant 8 : i32
    %0 = arith.muli %arg0, %c8_i32 : i32
    %c0_i32 = arith.constant 0 : i32
    %c8_i32_0 = arith.constant 8 : i32
    %1 = arith.addi %c0_i32, %c8_i32_0 : i32
    %c1_i32 = arith.constant 1 : i32
    scf.for %arg10 = %c0_i32 to %1 step %c1_i32  : i32 {
      %13 = arith.addi %0, %arg10 : i32
      %14 = arith.index_cast %13 : i32 to index
      %15 = memref.load %arg1[%14] : memref<8xi32, #tpu.memory_space<smem>>
      %16 = arith.index_cast %15 : i32 to index
      %c0_10 = arith.constant 0 : index
      %17 = vector.load %arg4[%16, %c0_10] : memref<32x32xf32, #tpu.memory_space<vmem>>, vector<1x32xf32>
      %18 = arith.index_cast %arg10 : i32 to index
      %c0_11 = arith.constant 0 : index
      %19 = vector.load %arg7[%18, %c0_11] : memref<8x32xf32, #tpu.memory_space<vmem>>, vector<1x32xf32>
      tpu.vector_store %arg7[%18, %c0_11], %17 {strides = array<i32>} : memref<8x32xf32, #tpu.memory_space<vmem>>, vector<1x32xf32>,
      %20 = arith.index_cast %13 : i32 to index
      %21 = memref.load %arg2[%20] : memref<8xi32, #tpu.memory_space<smem>>
      %22 = arith.index_cast %21 : i32 to index
      %c0_12 = arith.constant 0 : index
      %23 = vector.load %arg5[%22, %c0_12] : memref<64x32xf32, #tpu.memory_space<vmem>>, vector<1x32xf32>
      %24 = arith.index_cast %arg10 : i32 to index
      %c0_13 = arith.constant 0 : index
      %25 = vector.load %arg8[%24, %c0_13] : memref<8x32xf32, #tpu.memory_space<vmem>>, vector<1x32xf32>
      tpu.vector_store %arg8[%24, %c0_13], %23 {strides = array<i32>} : memref<8x32xf32, #tpu.memory_space<vmem>>, vector<1x32xf32>,
      %26 = arith.index_cast %13 : i32 to index
      %27 = memref.load %arg3[%26] : memref<8xi32, #tpu.memory_space<smem>>
      %28 = arith.index_cast %27 : i32 to index
      %c0_14 = arith.constant 0 : index
      %29 = vector.load %arg5[%28, %c0_14] : memref<64x32xf32, #tpu.memory_space<vmem>>, vector<1x32xf32>
      %30 = arith.index_cast %arg10 : i32 to index
      %c0_15 = arith.constant 0 : index
      %31 = vector.load %arg9[%30, %c0_15] : memref<8x32xf32, #tpu.memory_space<vmem>>, vector<1x32xf32>
      tpu.vector_store %arg9[%30, %c0_15], %29 {strides = array<i32>} : memref<8x32xf32, #tpu.memory_space<vmem>>, vector<1x32xf32>,
    }
    %c8_i32_1 = arith.constant 8 : i32
    %c0 = arith.constant 0 : index
    %c0_2 = arith.constant 0 : index
    %2 = vector.load %arg7[%c0, %c0_2] : memref<8x32xf32, #tpu.memory_space<vmem>>, vector<8x32xf32>
    %c0_3 = arith.constant 0 : index
    %c0_4 = arith.constant 0 : index
    %3 = vector.load %arg8[%c0_3, %c0_4] : memref<8x32xf32, #tpu.memory_space<vmem>>, vector<8x32xf32>
    %c0_5 = arith.constant 0 : index
    %c0_6 = arith.constant 0 : index
    %4 = vector.load %arg9[%c0_5, %c0_6] : memref<8x32xf32, #tpu.memory_space<vmem>>, vector<8x32xf32>
    %5 = arith.mulf %2, %3 : vector<8x32xf32>
    %cst = arith.constant dense<0.000000e+00> : vector<8xf32>
    %6 = vector.multi_reduction <add>, %5, %cst [1] : vector<8x32xf32> to vector<8xf32>
    %7 = vector.shape_cast %6 : vector<8xf32> to vector<8x1xf32>
    %8 = arith.mulf %2, %4 : vector<8x32xf32>
    %cst_7 = arith.constant dense<0.000000e+00> : vector<8xf32>
    %9 = vector.multi_reduction <add>, %8, %cst_7 [1] : vector<8x32xf32> to vector<8xf32>
    %10 = vector.shape_cast %9 : vector<8xf32> to vector<8x1xf32>
    %11 = tpu.concatenate %7, %10 in 1 : vector<8x1xf32>, vector<8x1xf32> -> vector<8x2xf32>
    %c0_8 = arith.constant 0 : index
    %c0_9 = arith.constant 0 : index
    %12 = vector.load %arg6[%c0_8, %c0_9] : memref<8x2xf32, #tpu.memory_space<vmem>>, vector<8x2xf32>
    tpu.vector_store %arg6[%c0_8, %c0_9], %11 {strides = array<i32>} : memref<8x2xf32, #tpu.memory_space<vmem>>, vector<8x2xf32>,
    return
  }
  func.func @transform_0(%arg0: i32, %arg1: memref<8xi32, #tpu.memory_space<smem>>, %arg2: memref<8xi32, #tpu.memory_space<smem>>, %arg3: memref<8xi32, #tpu.memory_space<smem>>) -> (i32, i32) {
    %c0_i32 = arith.constant 0 : i32
    %c0_i32_0 = arith.constant 0 : i32
    %c0_i32_1 = arith.constant 0 : i32
    return %c0_i32, %c0_i32_0 : i32, i32
  }
  func.func @transform_1(%arg0: i32, %arg1: memref<8xi32, #tpu.memory_space<smem>>, %arg2: memref<8xi32, #tpu.memory_space<smem>>, %arg3: memref<8xi32, #tpu.memory_space<smem>>) -> (i32, i32) {
    %c0_i32 = arith.constant 0 : i32
    %c0_i32_0 = arith.constant 0 : i32
    %c0_i32_1 = arith.constant 0 : i32
    return %c0_i32, %c0_i32_0 : i32, i32
  }
  func.func @transform_2(%arg0: i32, %arg1: memref<8xi32, #tpu.memory_space<smem>>, %arg2: memref<8xi32, #tpu.memory_space<smem>>, %arg3: memref<8xi32, #tpu.memory_space<smem>>) -> (i32, i32) {
    %c0_i32 = arith.constant 0 : i32
    %c0_i32_0 = arith.constant 0 : i32
    return %arg0, %c0_i32 : i32, i32
  }
}

</mosaic_0001>

<llo_original>
// kernel: bpr_forward.1
$region0: #{bpr_forward.1}
  #allocation0 [shape = 'u32[]', space=smem, size = 0x4, offset = 0x4, fixed_abs, tag = 'smem constant byte address 0x4 - core index']
  #allocation1 [shape = 'u32[144,128]{1,0:T(1,128)}', space=vmem, size = 0x12000, scoped, tag = 'internal scratch']
  #allocation2 [shape = 'f32[8,32]{1,0:T(8,128)}', space=vmem, size = 0x1000, scoped, tag = 'scratch operand']
  #allocation3 [shape = 'f32[8,32]{1,0:T(8,128)}', space=vmem, size = 0x1000, scoped, tag = 'scratch operand']
  #allocation4 [shape = 'f32[8,32]{1,0:T(8,128)}', space=vmem, size = 0x1000, scoped, tag = 'scratch operand']
  #allocation5 [shape = 's32[1]{0}', space=sflag, size = 0x4, scoped, tag = 'scoped memory for bpr_forward.1']
  #allocation6 [shape = 'u8[512]{0}', space=smem, size = 0x200, scoped, tag = 'prefetched SMEM operand 0']
  #allocation7 [shape = 'u8[512]{0}', space=smem, size = 0x200, scoped, tag = 'prefetched SMEM operand 1']
  #allocation8 [shape = 'u8[512]{0}', space=smem, size = 0x200, scoped, tag = 'prefetched SMEM operand 2']
  %s0 = inlined_call_operand.vmem [shape: s32[8], index: 0, kind: input, shape index: {}]
  %s1 = inlined_call_operand.vmem [shape: s32[8], index: 1, kind: input, shape index: {}]
  %s2 = inlined_call_operand.vmem [shape: s32[8], index: 2, kind: input, shape index: {}]
  %s3 = inlined_call_operand.vmem [shape: f32[32,32], index: 3, kind: input, shape index: {}]
  %s4 = inlined_call_operand.vmem [shape: f32[64,32], index: 4, kind: input, shape index: {}]
  %s5 = inlined_call_operand.vmem [shape: f32[8,2], index: 5, kind: output, shape index: {}]
  %s6 = sld [smem:[#allocation0]]
  $region25: #{bpr_forward.1} parent=0
    _
  %s8 = ssub.s32 1, %s6
  %s9 = scalar_select 0, %s8, %s6
  %s10 = sshll.u32 %s0, 4
  %s11 = int_to_ptr.vmem [resolvable:$true] %s10
  %13 = dma.vmem_to_smem %s11, 16, [#allocation6], [#allocation5]
  %s14 = sshll.u32 %s1, 4
  %s15 = int_to_ptr.vmem [resolvable:$true] %s14
  %17 = dma.vmem_to_smem %s15, 16, [#allocation7], [#allocation5]
  %s18 = sshll.u32 %s2, 4
  %s19 = int_to_ptr.vmem [resolvable:$true] %s18
  %21 = dma.vmem_to_smem %s19, 16, [#allocation8], [#allocation5]
  %22 = dma.done [#allocation5], 48
  %23 = sfence
  // Predicated region
  $region2: #{bpr_forward.1} parent=0 // pred_check
    _
  $region3: #{bpr_forward.1} parent=0 // pred_check_branch
    %25 = sbr.rel (0) target = $region5
  $region4: #{bpr_forward.1} parent=0 // pred_region
    _
  $region5: #{bpr_forward.1} parent=0 // pred_fallthru
    _
  // Predicated region
  $region6: #{bpr_forward.1} parent=0 // pred_check
    _
  $region7: #{bpr_forward.1} parent=0 // pred_check_branch
    %27 = sbr.rel (0) target = $region9
  $region8: #{bpr_forward.1} parent=0 // pred_region
    _
  $region9: #{bpr_forward.1} parent=0 // pred_fallthru
    _
  %s28 = smul.u32 0, 8
  loop: start=0, step=1, limit=8
  $region10: #{bpr_forward.1} parent=0 // loop_pre_header
    _
  $region11: #{bpr_forward.1} parent=0 // loop_header
    %s30 = sphi 0, %s34
    %p31 = scmp.ge.s32.totalorder %s30, 8
  $region12: #{bpr_forward.1} parent=0 // loop_header_branch
    %33 = sbr.rel (%p31) target = $region16
  $region13: #{bpr_forward.1} parent=0 // loop_body
    %s35 = sadd.s32 %s28, %s30
    %s36 = sld [smem:[#allocation6 + %s35]]
    %s37 = scalar_lea.vmem %s3, %s36
    %v38 = vld [vmem:[%s37] sm:$0x1]
    %s39 = scalar_lea.vmem [#allocation2], %s30
    %vm40 = vcmask 253952
    %41 = vst.msk [vmem:[%s39] sm:$0x1] %vm40, %v38
    %s42 = sld [smem:[#allocation7 + %s35]]
    %s43 = scalar_lea.vmem %s4, %s42
    %v44 = vld [vmem:[%s43] sm:$0x1]
    %s45 = scalar_lea.vmem [#allocation3], %s30
    %46 = vst.msk [vmem:[%s45] sm:$0x1] %vm40, %v44
    %s47 = sld [smem:[#allocation8 + %s35]]
    %s48 = scalar_lea.vmem %s4, %s47
    %v49 = vld [vmem:[%s48] sm:$0x1]
    %s50 = scalar_lea.vmem [#allocation4], %s30
    %51 = vst.msk [vmem:[%s50] sm:$0x1] %vm40, %v49
  $region14: #{bpr_forward.1} parent=0 // loop_footer
    %s34 = sadd.s32 1, %s30
  $region15: #{bpr_forward.1} parent=0 // loop_footer_branch
    %29 = sbr.rel target = $region11
  $region16: #{bpr_forward.1} parent=0 // loop_exit
    _
  %v52 = vld [vmem:[#allocation2] sm:$0xff]
  %v53 = vld [vmem:[#allocation3] sm:$0xff]
  %v54 = vld [vmem:[#allocation4] sm:$0xff]
  %v55 = vmul.f32 %v52, %v53
  %vm56 = vcmask 261120
  %v57 = vsel %vm56, %v55, 0.0
  %58 = vadd.xlane.f32.xlu0 %v57
  %v59 = vpop.xlane.xlu0 %58
  %v60 = vmul.f32 %v52, %v54
  %v61 = vsel %vm56, %v60, 0.0
  %62 = vadd.xlane.f32.xlu0 %v61
  %v63 = vpop.xlane.xlu0 %62
  %vm64 = vcmask 7168
  %v65 = vsel %vm64, %v59, %v63
  %vm66 = vcmask 15360
  %67 = vst.msk [vmem:[%s5] sm:$0xff] %vm66, %v65
  // Predicated region
  $region17: #{bpr_forward.1} parent=0 // pred_check
    _
  $region18: #{bpr_forward.1} parent=0 // pred_check_branch
    %69 = sbr.rel (0) target = $region20
  $region19: #{bpr_forward.1} parent=0 // pred_region
    _
  $region20: #{bpr_forward.1} parent=0 // pred_fallthru
    _
  // Predicated region
  $region21: #{bpr_forward.1} parent=0 // pred_check
    _
  $region22: #{bpr_forward.1} parent=0 // pred_check_branch
    %71 = sbr.rel (0) target = $region24
  $region23: #{bpr_forward.1} parent=0 // pred_region
    _
  $region24: #{bpr_forward.1} parent=0 // pred_fallthru
    _

</llo_original>
